<compile_context>
chip_gen: v7x
topology: tpu7x:2x2x1
jax: 0.10.0
libtpu: 0.0.40
codegen_flags: <defaults>
</compile_context>

<pallas_src>
import functools
import math

import jax
import jax.numpy as jnp
from jax.experimental import pallas as pl
from jax.experimental.pallas import tpu as pltpu

ALPHA = 0.25
GAMMA = 2.0
EPS = 1e-6  # unused in the forward math (kept for parity with the module __init__)

_LANE = 512        # last-dim block width: multiple of 128 -> lane-dense stores
_MAX_ROW_TILE = 512  # 512 x 512 x 4B = 1 MiB per array per grid step


def _round_up(x, m):
    return ((x + m - 1) // m) * m


def _focal_loss_kernel(x_ref, t_ref, o_ref, *, alpha, gamma):
    x = x_ref[...].astype(jnp.float32)
    t = t_ref[...].astype(jnp.float32)

    # One exp reused for both BCE and sigmoid.
    e = jnp.exp(-jnp.abs(x))

    # Numerically-stable BCE-with-logits (== F.binary_cross_entropy_with_logits):
    #   ce = max(x, 0) - x*t + log(1 + exp(-|x|))
    ce = jnp.maximum(x, 0.0) - x * t + jnp.log1p(e)

    # sigmoid(x) from the same exp:  x>=0 -> 1/(1+e),  x<0 -> e/(1+e)
    inv = 1.0 / (1.0 + e)
    probs = jnp.where(x >= 0.0, inv, e * inv)

    # p_t = p*t + (1-p)*(1-t)
    p_t = probs * t + (1.0 - probs) * (1.0 - t)
    one_minus_pt = 1.0 - p_t

    # gamma is a static Python float -> pick the cheap path at trace time.
    if float(gamma) == 2.0:
        focal_factor = one_minus_pt * one_minus_pt
    elif float(gamma) == 1.0:
        focal_factor = one_minus_pt
    else:
        focal_factor = one_minus_pt ** gamma

    alpha_factor = alpha * t + (1.0 - alpha) * (1.0 - t)
    o_ref[...] = (alpha_factor * focal_factor * ce).astype(o_ref.dtype)


def custom_focal_loss(inputs, targets, bbox_areas=None, alpha=ALPHA,
                      gamma=GAMMA, reduction="none"):
    """inputs/targets: (B, N, C). Returns per-element focal loss (or reduced)."""
    del bbox_areas  # unused by the reference module's forward
    B, N, C = inputs.shape
    total = B * N * C
    out_dtype = inputs.dtype

    # Lane-dense 2-D view of the flattened data, padded to full blocks.
    rows = max(1, math.ceil(total / _LANE))
    row_tile = min(_MAX_ROW_TILE, _round_up(rows, 8))
    rows_padded = _round_up(rows, row_tile)
    padded_total = rows_padded * _LANE

    x_flat = inputs.reshape(-1)
    t_flat = targets.reshape(-1).astype(inputs.dtype)
    pad = padded_total - total
    x2d = jnp.pad(x_flat, (0, pad)).reshape(rows_padded, _LANE)
    t2d = jnp.pad(t_flat, (0, pad)).reshape(rows_padded, _LANE)

    kernel = functools.partial(_focal_loss_kernel,
                               alpha=float(alpha), gamma=float(gamma))

    loss2d = pl.pallas_call(
        kernel,
        out_shape=jax.ShapeDtypeStruct((rows_padded, _LANE), out_dtype),
        grid_spec=pltpu.PrefetchScalarGridSpec(
            num_scalar_prefetch=0,
            grid=(rows_padded // row_tile,),
            in_specs=[
                pl.BlockSpec((row_tile, _LANE), lambda i: (i, 0)),
                pl.BlockSpec((row_tile, _LANE), lambda i: (i, 0)),
            ],
            out_specs=pl.BlockSpec((row_tile, _LANE), lambda i: (i, 0)),
        ),
        compiler_params=pltpu.CompilerParams(
            dimension_semantics=("parallel",),
        ),
    )(x2d, t2d)

    # Drop padding before any reduction / reshape.
    loss = loss2d.reshape(-1)[:total]

    # TODO(synk): for reduction='mean'/'sum' the partial sum could be fused
    # into the kernel (SMEM/VMEM accumulator) to avoid the HBM round-trip.
    if reduction == "mean":
        return loss.mean()
    elif reduction == "sum":
        return loss.sum()
    return loss.reshape(B, N, C)


def _reference(inputs, targets, alpha=ALPHA, gamma=GAMMA):
    x = inputs.astype(jnp.float32)
    t = targets.astype(jnp.float32)
    probs = jax.nn.sigmoid(x)
    ce = jnp.maximum(x, 0.0) - x * t + jnp.log1p(jnp.exp(-jnp.abs(x)))
    p_t = probs * t + (1 - probs) * (1 - t)
    return (alpha * t + (1 - alpha) * (1 - t)) * (1 - p_t) ** gamma * ce


if __name__ == "__main__":
    key = jax.random.PRNGKey(0)
    k1, k2 = jax.random.split(key)

    B, N, C = 2, 8, 32
    inputs = jax.random.normal(k1, (B, N, C), dtype=jnp.float32)
    # binary-ish targets as floats (multi-label one-hot style)
    targets = (jax.random.uniform(k2, (B, N, C)) > 0.8).astype(jnp.float32)

    loss = custom_focal_loss(inputs, targets)
    loss = jax.block_until_ready(loss)

    ref = _reference(inputs, targets)
    assert loss.shape == (B, N, C)
    assert jnp.allclose(loss, ref, atol=1e-5, rtol=1e-4)

    print("KERNEL_OK")
</pallas_src>

<mosaic_0001>
module attributes {stable_mosaic.version = 11 : i64} {
  func.func @_focal_loss_kernel(%arg0: i32, %arg1: memref<8x512xf32, #tpu.memory_space<vmem>>, %arg2: memref<8x512xf32, #tpu.memory_space<vmem>>, %arg3: memref<8x512xf32, #tpu.memory_space<vmem>>) attributes {dimension_semantics = [#tpu.dimension_semantics<parallel>], iteration_bounds = array<i64: 1>, scalar_prefetch = 0 : i64, scratch_operands = 0 : i64, tpu.core_type = #tpu.core_type<tc>, window_params = [{transform_indices = @transform_0, window_bounds = array<i64: 8, 512>}, {transform_indices = @transform_1, window_bounds = array<i64: 8, 512>}, {transform_indices = @transform_2, window_bounds = array<i64: 8, 512>}]} {
    %c0 = arith.constant 0 : index
    %c0_0 = arith.constant 0 : index
    %0 = vector.load %arg1[%c0, %c0_0] : memref<8x512xf32, #tpu.memory_space<vmem>>, vector<8x512xf32>
    %c0_1 = arith.constant 0 : index
    %c0_2 = arith.constant 0 : index
    %1 = vector.load %arg2[%c0_1, %c0_2] : memref<8x512xf32, #tpu.memory_space<vmem>>, vector<8x512xf32>
    %2 = math.absf %0 : vector<8x512xf32>
    %cst = arith.constant 0.000000e+00 : f32
    %3 = vector.broadcast %cst : f32 to vector<8x512xf32>
    %4 = arith.subf %3, %2 : vector<8x512xf32>
    %5 = math.exp %4 : vector<8x512xf32>
    %cst_3 = arith.constant 0.000000e+00 : f32
    %6 = vector.broadcast %cst_3 : f32 to vector<8x512xf32>
    %7 = arith.maximumf %0, %6 : vector<8x512xf32>
    %8 = arith.mulf %0, %1 : vector<8x512xf32>
    %9 = arith.subf %7, %8 : vector<8x512xf32>
    %10 = math.log1p %5 : vector<8x512xf32>
    %11 = arith.addf %9, %10 : vector<8x512xf32>
    %cst_4 = arith.constant 1.000000e+00 : f32
    %12 = vector.broadcast %cst_4 : f32 to vector<8x512xf32>
    %13 = arith.addf %12, %5 : vector<8x512xf32>
    %cst_5 = arith.constant 1.000000e+00 : f32
    %14 = vector.broadcast %cst_5 : f32 to vector<8x512xf32>
    %15 = arith.divf %14, %13 : vector<8x512xf32>
    %cst_6 = arith.constant 0.000000e+00 : f32
    %16 = vector.broadcast %cst_6 : f32 to vector<8x512xf32>
    %17 = arith.cmpf oge, %0, %16 : vector<8x512xf32>
    %18 = arith.mulf %5, %15 : vector<8x512xf32>
    %19 = arith.select %17, %15, %18 : vector<8x512xi1>, vector<8x512xf32>
    %20 = arith.mulf %19, %1 : vector<8x512xf32>
    %cst_7 = arith.constant 1.000000e+00 : f32
    %21 = vector.broadcast %cst_7 : f32 to vector<8x512xf32>
    %22 = arith.subf %21, %19 : vector<8x512xf32>
    %cst_8 = arith.constant 1.000000e+00 : f32
    %23 = vector.broadcast %cst_8 : f32 to vector<8x512xf32>
    %24 = arith.subf %23, %1 : vector<8x512xf32>
    %25 = arith.mulf %22, %24 : vector<8x512xf32>
    %26 = arith.addf %20, %25 : vector<8x512xf32>
    %cst_9 = arith.constant 1.000000e+00 : f32
    %27 = vector.broadcast %cst_9 : f32 to vector<8x512xf32>
    %28 = arith.subf %27, %26 : vector<8x512xf32>
    %29 = arith.mulf %28, %28 : vector<8x512xf32>
    %cst_10 = arith.constant 2.500000e-01 : f32
    %30 = vector.broadcast %cst_10 : f32 to vector<8x512xf32>
    %31 = arith.mulf %30, %1 : vector<8x512xf32>
    %cst_11 = arith.constant 1.000000e+00 : f32
    %32 = vector.broadcast %cst_11 : f32 to vector<8x512xf32>
    %33 = arith.subf %32, %1 : vector<8x512xf32>
    %cst_12 = arith.constant 7.500000e-01 : f32
    %34 = vector.broadcast %cst_12 : f32 to vector<8x512xf32>
    %35 = arith.mulf %34, %33 : vector<8x512xf32>
    %36 = arith.addf %31, %35 : vector<8x512xf32>
    %37 = arith.mulf %36, %29 : vector<8x512xf32>
    %38 = arith.mulf %37, %11 : vector<8x512xf32>
    %c0_13 = arith.constant 0 : index
    %c0_14 = arith.constant 0 : index
    %39 = vector.load %arg3[%c0_13, %c0_14] : memref<8x512xf32, #tpu.memory_space<vmem>>, vector<8x512xf32>
    tpu.vector_store %arg3[%c0_13, %c0_14], %38 {strides = array<i32>} : memref<8x512xf32, #tpu.memory_space<vmem>>, vector<8x512xf32>,
    return
  }
  func.func @transform_0(%arg0: i32) -> (i32, i32) {
    %c0_i32 = arith.constant 0 : i32
    %c0_i32_0 = arith.constant 0 : i32
    return %arg0, %c0_i32 : i32, i32
  }
  func.func @transform_1(%arg0: i32) -> (i32, i32) {
    %c0_i32 = arith.constant 0 : i32
    %c0_i32_0 = arith.constant 0 : i32
    return %arg0, %c0_i32 : i32, i32
  }
  func.func @transform_2(%arg0: i32) -> (i32, i32) {
    %c0_i32 = arith.constant 0 : i32
    %c0_i32_0 = arith.constant 0 : i32
    return %arg0, %c0_i32 : i32, i32
  }
}

</mosaic_0001>

<llo_original>
// kernel: tpu_custom_call.1
$region0: #{tpu_custom_call.1}
  #allocation0 [shape = 'u32[]', space=smem, size = 0x4, offset = 0x4, fixed_abs, tag = 'smem constant byte address 0x4 - core index']
  #allocation1 [shape = 'u32[144,128]{1,0:T(1,128)}', space=vmem, size = 0x12000, scoped, tag = 'internal scratch']
  %s0 = inlined_call_operand.hbm [shape: f32[8,512], index: 0, kind: input, shape index: {}]
  %s1 = inlined_call_operand.hbm [shape: f32[8,512], index: 1, kind: input, shape index: {}]
  %s2 = inlined_call_operand.hbm [shape: f32[8,512], index: 2, kind: output, shape index: {}]
  %s3 = sld [smem:[#allocation0]]
  $region26: #{tpu_custom_call.1} parent=0
    _
  %s5 = ssub.s32 1, %s3
  %s6 = scalar_select 0, %s5, %s3
  $region1: #{tpu_custom_call.1} parent=0
    #allocation2 [shape = 'u8[16384]{0}', space=vmem, size = 0x4000, scoped, tag = 'input window, operand 0, single buffered']
    #allocation3 [shape = 's32[1]{0}', space=sflag, size = 0x4, scoped, tag = 'scoped memory for tpu_custom_call.1']
    #allocation4 [shape = 's32[1]{0}', space=sflag, size = 0x4, scoped, tag = 'scoped memory for tpu_custom_call.1']
    #allocation5 [shape = 'u8[16384]{0}', space=vmem, size = 0x4000, scoped, tag = 'input window, operand 1, single buffered']
    #allocation6 [shape = 's32[1]{0}', space=sflag, size = 0x4, scoped, tag = 'scoped memory for tpu_custom_call.1']
    #allocation7 [shape = 'u8[16384]{0}', space=vmem, size = 0x4000, scoped, tag = 'output window, operand 0, single buffered']
    %7 = vsyncpa [#allocation3], 0
    %8 = vsyncpa [#allocation6], 0
    %9 = vsyncpa [#allocation4], 0
    // Predicated region
    $region2: #{tpu_custom_call.1} parent=1 // pred_check
      _
    $region3: #{tpu_custom_call.1} parent=1 // pred_check_branch
      %11 = sbr.rel (0) target = $region5
    $region4: #{tpu_custom_call.1} parent=1 // pred_region
      %s13 = ssub.s32 512, 512
      %14 = vsyncadd [#allocation3], %s13
      %s16 = sshll.u32 [#allocation2], 4
      %s17 = int_to_ptr.vmem [resolvable:$true] %s16
      %19 = dma.hbm_to_vmem [thread:$0]  %s0, 512, %s17, [#allocation3]
    $region5: #{tpu_custom_call.1} parent=1 // pred_fallthru
      _
    // Predicated region
    $region6: #{tpu_custom_call.1} parent=1 // pred_check
      _
    $region7: #{tpu_custom_call.1} parent=1 // pred_check_branch
      %21 = sbr.rel (0) target = $region9
    $region8: #{tpu_custom_call.1} parent=1 // pred_region
      %s23 = ssub.s32 512, 512
      %24 = vsyncadd [#allocation6], %s23
      %s26 = sshll.u32 [#allocation5], 4
      %s27 = int_to_ptr.vmem [resolvable:$true] %s26
      %29 = dma.hbm_to_vmem [thread:$0]  %s1, 512, %s27, [#allocation6]
    $region9: #{tpu_custom_call.1} parent=1 // pred_fallthru
      _
    // Predicated region
    $region10: #{tpu_custom_call.1} parent=1 // pred_check
      _
    $region11: #{tpu_custom_call.1} parent=1 // pred_check_branch
      %31 = sbr.rel (0) target = $region13
    $region12: #{tpu_custom_call.1} parent=1 // pred_region
      %32 = dma.done [#allocation3], 512
    $region13: #{tpu_custom_call.1} parent=1 // pred_fallthru
      _
    // Predicated region
    $region14: #{tpu_custom_call.1} parent=1 // pred_check
      _
    $region15: #{tpu_custom_call.1} parent=1 // pred_check_branch
      %34 = sbr.rel (0) target = $region17
    $region16: #{tpu_custom_call.1} parent=1 // pred_region
      %35 = dma.done [#allocation6], 512
    $region17: #{tpu_custom_call.1} parent=1 // pred_fallthru
      _
    %v36 = vld [vmem:[#allocation2] sm:$0xff]
    %v37 = vld [vmem:[#allocation2 + $0x8] sm:$0xff]
    %v38 = vld [vmem:[#allocation2 + $0x10] sm:$0xff]
    %v39 = vld [vmem:[#allocation2 + $0x18] sm:$0xff]
    %v40 = vld [vmem:[#allocation5] sm:$0xff]
    %v41 = vld [vmem:[#allocation5 + $0x8] sm:$0xff]
    %v42 = vld [vmem:[#allocation5 + $0x10] sm:$0xff]
    %v43 = vld [vmem:[#allocation5 + $0x18] sm:$0xff]
    %v44 = vand.u32 2147483647, %v36
    %v45 = vand.u32 2147483647, %v37
    %v46 = vand.u32 2147483647, %v38
    %v47 = vand.u32 2147483647, %v39
    %v48 = vsub.f32 0.0, %v44
    %v49 = vsub.f32 0.0, %v45
    %v50 = vsub.f32 0.0, %v46
    %v51 = vsub.f32 0.0, %v47
    %v52 = vmul.f32 %v48, 1.442695
    %v53 = vpow.pop %v52
    %v54 = vmul.f32 %v49, 1.442695
    %v55 = vpow.pop %v54
    %v56 = vmul.f32 %v50, 1.442695
    %v57 = vpow.pop %v56
    %v58 = vmul.f32 %v51, 1.442695
    %v59 = vpow.pop %v58
    %v60 = vmax.f32 %v36, 0.0
    %v61 = vmax.f32 %v37, 0.0
    %v62 = vmax.f32 %v38, 0.0
    %v63 = vmax.f32 %v39, 0.0
    %v64 = vmul.f32 %v36, %v40
    %v65 = vmul.f32 %v37, %v41
    %v66 = vmul.f32 %v38, %v42
    %v67 = vmul.f32 %v39, %v43
    %v68 = vsub.f32 %v60, %v64
    %v69 = vsub.f32 %v61, %v65
    %v70 = vsub.f32 %v62, %v66
    %v71 = vsub.f32 %v63, %v67
    %v72 = vadd.f32 %v53, 1.0
    %v73 = vlog2.pop %v72
    %v74 = vmul.f32 %v73, 0.6931472
    %v75 = vmul.f32 -0.5, %v53
    %v76 = vadd.f32 %v75, 1.0
    %v77 = vmul.f32 %v76, %v53
    %v78 = vand.u32 2147483647, %v53
    %vm79 = vcmp.lt.f32.partialorder %v78, 0.0004427343
    %v80 = vsel %vm79, %v77, %v74
    %v81 = vadd.f32 %v55, 1.0
    %v82 = vlog2.pop %v81
    %v83 = vmul.f32 %v82, 0.6931472
    %v84 = vmul.f32 -0.5, %v55
    %v85 = vadd.f32 %v84, 1.0
    %v86 = vmul.f32 %v85, %v55
    %v87 = vand.u32 2147483647, %v55
    %vm88 = vcmp.lt.f32.partialorder %v87, 0.0004427343
    %v89 = vsel %vm88, %v86, %v83
    %v90 = vadd.f32 %v57, 1.0
    %v91 = vlog2.pop %v90
    %v92 = vmul.f32 %v91, 0.6931472
    %v93 = vmul.f32 -0.5, %v57
    %v94 = vadd.f32 %v93, 1.0
    %v95 = vmul.f32 %v94, %v57
    %v96 = vand.u32 2147483647, %v57
    %vm97 = vcmp.lt.f32.partialorder %v96, 0.0004427343
    %v98 = vsel %vm97, %v95, %v92
    %v99 = vadd.f32 %v59, 1.0
    %v100 = vlog2.pop %v99
    %v101 = vmul.f32 %v100, 0.6931472
    %v102 = vmul.f32 -0.5, %v59
    %v103 = vadd.f32 %v102, 1.0
    %v104 = vmul.f32 %v103, %v59
    %v105 = vand.u32 2147483647, %v59
    %vm106 = vcmp.lt.f32.partialorder %v105, 0.0004427343
    %v107 = vsel %vm106, %v104, %v101
    %v108 = vadd.f32 %v68, %v80
    %v109 = vadd.f32 %v69, %v89
    %v110 = vadd.f32 %v70, %v98
    %v111 = vadd.f32 %v71, %v107
    %v112 = vadd.f32 %v53, 1.0
    %v113 = vadd.f32 %v55, 1.0
    %v114 = vadd.f32 %v57, 1.0
    %v115 = vadd.f32 %v59, 1.0
    %v116 = vrcp.pop %v112
    %v117 = vmul.f32 1.0, %v116
    %v118 = vrcp.pop %v113
    %v119 = vmul.f32 1.0, %v118
    %v120 = vrcp.pop %v114
    %v121 = vmul.f32 1.0, %v120
    %v122 = vrcp.pop %v115
    %v123 = vmul.f32 1.0, %v122
    %vm124 = vcmp.ge.f32.partialorder %v36, 0.0
    %vm125 = vcmp.ge.f32.partialorder %v37, 0.0
    %vm126 = vcmp.ge.f32.partialorder %v38, 0.0
    %vm127 = vcmp.ge.f32.partialorder %v39, 0.0
    %v128 = vmul.f32 %v53, %v117
    %v129 = vmul.f32 %v55, %v119
    %v130 = vmul.f32 %v57, %v121
    %v131 = vmul.f32 %v59, %v123
    %v132 = vsel %vm124, %v117, %v128
    %v133 = vsel %vm125, %v119, %v129
    %v134 = vsel %vm126, %v121, %v130
    %v135 = vsel %vm127, %v123, %v131
    %v136 = vmul.f32 %v132, %v40
    %v137 = vmul.f32 %v133, %v41
    %v138 = vmul.f32 %v134, %v42
    %v139 = vmul.f32 %v135, %v43
    %v140 = vsub.f32 1.0, %v132
    %v141 = vsub.f32 1.0, %v133
    %v142 = vsub.f32 1.0, %v134
    %v143 = vsub.f32 1.0, %v135
    %v144 = vsub.f32 1.0, %v40
    %v145 = vsub.f32 1.0, %v41
    %v146 = vsub.f32 1.0, %v42
    %v147 = vsub.f32 1.0, %v43
    %v148 = vmul.f32 %v140, %v144
    %v149 = vmul.f32 %v141, %v145
    %v150 = vmul.f32 %v142, %v146
    %v151 = vmul.f32 %v143, %v147
    %v152 = vadd.f32 %v136, %v148
    %v153 = vadd.f32 %v137, %v149
    %v154 = vadd.f32 %v138, %v150
    %v155 = vadd.f32 %v139, %v151
    %v156 = vsub.f32 1.0, %v152
    %v157 = vsub.f32 1.0, %v153
    %v158 = vsub.f32 1.0, %v154
    %v159 = vsub.f32 1.0, %v155
    %v160 = vmul.f32 %v156, %v156
    %v161 = vmul.f32 %v157, %v157
    %v162 = vmul.f32 %v158, %v158
    %v163 = vmul.f32 %v159, %v159
    %v164 = vmul.f32 %v40, 0.25
    %v165 = vmul.f32 %v41, 0.25
    %v166 = vmul.f32 %v42, 0.25
    %v167 = vmul.f32 %v43, 0.25
    %v168 = vmul.f32 %v144, 0.75
    %v169 = vmul.f32 %v145, 0.75
    %v170 = vmul.f32 %v146, 0.75
    %v171 = vmul.f32 %v147, 0.75
    %v172 = vadd.f32 %v164, %v168
    %v173 = vadd.f32 %v165, %v169
    %v174 = vadd.f32 %v166, %v170
    %v175 = vadd.f32 %v167, %v171
    %v176 = vmul.f32 %v172, %v160
    %v177 = vmul.f32 %v173, %v161
    %v178 = vmul.f32 %v174, %v162
    %v179 = vmul.f32 %v175, %v163
    %v180 = vmul.f32 %v176, %v108
    %v181 = vmul.f32 %v177, %v109
    %v182 = vmul.f32 %v178, %v110
    %v183 = vmul.f32 %v179, %v111
    %184 = vst [vmem:[#allocation7] sm:$0xff] %v180
    %185 = vst [vmem:[#allocation7 + $0x8] sm:$0xff] %v181
    %186 = vst [vmem:[#allocation7 + $0x10] sm:$0xff] %v182
    %187 = vst [vmem:[#allocation7 + $0x18] sm:$0xff] %v183
    // Predicated region
    $region18: #{tpu_custom_call.1} parent=1 // pred_check
      _
    $region19: #{tpu_custom_call.1} parent=1 // pred_check_branch
      %189 = sbr.rel (0) target = $region21
    $region20: #{tpu_custom_call.1} parent=1 // pred_region
      %s191 = ssub.s32 512, 512
      %192 = vsyncadd [#allocation4], %s191
      %s194 = sshll.u32 [#allocation7], 4
      %s195 = int_to_ptr.vmem [resolvable:$true] %s194
      %197 = dma.vmem_to_hbm [thread:$0]  %s195, 512, %s2, [#allocation4]
    $region21: #{tpu_custom_call.1} parent=1 // pred_fallthru
      _
    // Predicated region
    $region22: #{tpu_custom_call.1} parent=1 // pred_check
      _
    $region23: #{tpu_custom_call.1} parent=1 // pred_check_branch
      %199 = sbr.rel (0) target = $region25
    $region24: #{tpu_custom_call.1} parent=1 // pred_region
      %200 = dma.done [#allocation4], 512
    $region25: #{tpu_custom_call.1} parent=1 // pred_fallthru
      _
    %201 = vsyncpa [#allocation3], 1
    %202 = vsyncpa [#allocation6], 1
    %203 = vsyncpa [#allocation4], 1

</llo_original>
